<compile_context>
chip_gen: v6e
topology: v6e:2x2x1
jax: 0.10.0
libtpu: 0.0.40
codegen_flags: <defaults>
</compile_context>

<pallas_src>
import functools
import math

import jax
import jax.numpy as jnp
import numpy as np
from jax.experimental import pallas as pl
from jax.experimental.pallas import tpu as pltpu


def _round_up(x, m):
    return ((x + m - 1) // m) * m


# ---------------------------------------------------------------------------
# Constant (parameter) construction — plain numpy, cached per configuration.
# ---------------------------------------------------------------------------
def _make_dft_matrices(n_fft, n_freqs):
    """cos/sin DFT matrices (n_fft, n_freqs) so power = (x@cos)^2 + (x@sin)^2."""
    n = np.arange(n_fft)[:, None].astype(np.float64)
    k = np.arange(n_freqs)[None, :].astype(np.float64)
    ang = 2.0 * math.pi * n * k / n_fft
    return np.cos(ang), -np.sin(ang)


def _make_mel_filterbank(n_freqs, f_min, f_max, n_mels, sample_rate):
    """torchaudio.functional.melscale_fbanks (mel_scale='htk', norm=None)."""
    def hz_to_mel(f):
        return 2595.0 * np.log10(1.0 + f / 700.0)

    def mel_to_hz(m):
        return 700.0 * (10.0 ** (m / 2595.0) - 1.0)

    all_freqs = np.linspace(0.0, sample_rate // 2, n_freqs)
    m_pts = np.linspace(hz_to_mel(f_min), hz_to_mel(f_max), n_mels + 2)
    f_pts = mel_to_hz(m_pts)
    f_diff = f_pts[1:] - f_pts[:-1]
    slopes = f_pts[None, :] - all_freqs[:, None]
    down = -slopes[:, :-2] / f_diff[:-1]
    up = slopes[:, 2:] / f_diff[1:]
    return np.maximum(0.0, np.minimum(down, up))        # (n_freqs, n_mels)


def _make_dct_matrix(n_mfcc, n_mels, norm):
    """torchaudio.functional.create_dct -> (n_mels, n_mfcc)."""
    n = np.arange(n_mels, dtype=np.float64)
    k = np.arange(n_mfcc, dtype=np.float64)
    dct = np.cos(math.pi / n_mels * (n[:, None] + 0.5) * k[None, :])
    if norm == "ortho":
        dct[:, 0] *= 1.0 / math.sqrt(2.0)
        dct *= math.sqrt(2.0 / n_mels)
    else:
        dct *= 2.0
    return dct


@functools.lru_cache(maxsize=None)
def _build_constants(n_fft, n_mels, n_mfcc, sample_rate, f_min, f_max, norm):
    """Returns (w_cat, fb, dct_t, n_freqs) as float32 numpy arrays.

    w_cat : (n_fft, 2*n_freqs)  fused [cos | sin] DFT matrix
    fb    : (n_freqs, n_mels)   mel filterbank
    dct_t : (n_mfcc, n_mels)    transposed DCT matrix
    n_freqs: number of retained frequency bins (trailing all-zero mel rows —
             e.g. the Nyquist bin when f_max < sr/2 — are dropped exactly,
             down to a 128-lane-aligned count).
    """
    n_freqs_full = n_fft // 2 + 1
    fb_full = _make_mel_filterbank(n_freqs_full, f_min, f_max, n_mels, sample_rate)
    n_freqs = n_freqs_full
    while n_freqs > 1 and n_freqs % 128 != 0 and not np.any(fb_full[n_freqs - 1]):
        n_freqs -= 1
    cos_m, sin_m = _make_dft_matrices(n_fft, n_freqs)
    w_cat = np.concatenate([cos_m, sin_m], axis=1).astype(np.float32)
    fb = fb_full[:n_freqs].astype(np.float32)
    dct_t = _make_dct_matrix(n_mfcc, n_mels, norm).T.astype(np.float32)
    return w_cat, fb, dct_t, n_freqs


# ---------------------------------------------------------------------------
# Pallas kernels
# ---------------------------------------------------------------------------
def _spectrum_to_mfcc(y, fb_ref, dct_t_ref, out_ref):
    """y: (TILE_T, 2*n_freqs) = [re | im].  Writes (n_mfcc, TILE_T) to out_ref[0]."""
    n_freqs = fb_ref.shape[0]
    re = y[:, :n_freqs]                                   # lane-aligned static slice
    im = y[:, n_freqs:]
    power = re * re + im * im                             # (TILE_T, n_freqs)
    mel = jnp.dot(power, fb_ref[...], preferred_element_type=jnp.float32)
    log_mel = jnp.log(mel + 1e-6)                         # (TILE_T, n_mels)
    # Transposed DCT -> lane-dense (n_mfcc, TILE_T) output block (dense stores).
    mfcc_t = jnp.dot(dct_t_ref[...], log_mel.T, preferred_element_type=jnp.float32)
    out_ref[0] = mfcc_t


def _mfcc_kernel_split(a_ref, b_ref, w_top_ref, w_bot_ref, fb_ref, dct_t_ref, out_ref):
    # frame[t] = [chunk[t] | chunk[t+1]]  =>  frame @ W = a @ W_top + b @ W_bot
    y = jnp.dot(a_ref[0], w_top_ref[...], preferred_element_type=jnp.float32)
    y = y + jnp.dot(b_ref[0], w_bot_ref[...], preferred_element_type=jnp.float32)
    _spectrum_to_mfcc(y, fb_ref, dct_t_ref, out_ref)


def _mfcc_kernel_frames(x_ref, w_ref, fb_ref, dct_t_ref, out_ref):
    y = jnp.dot(x_ref[0], w_ref[...], preferred_element_type=jnp.float32)
    _spectrum_to_mfcc(y, fb_ref, dct_t_ref, out_ref)


# ---------------------------------------------------------------------------
# Wrapper: full Mfcc.forward.  Returns (B, n_mfcc, T), matching PyTorch.
# ---------------------------------------------------------------------------
def mfcc_pallas(audio, *, n_fft, hop_length, n_mels, n_mfcc,
                sample_rate=16000, f_min=40.0, f_max=7600.0,
                norm="ortho", pad_end=True, tile_t=256):
    audio = audio.astype(jnp.float32)
    B, L = audio.shape

    if pad_end:
        remainder = (L - n_fft) % hop_length
        pad = 0 if remainder == 0 else hop_length - remainder
    else:
        pad = 0
    L_pad0 = L + pad
    T = 1 + (L_pad0 - n_fft) // hop_length

    # Frame-row tiling: full-height MXU tiles, bounded VMEM for long audio.
    if T < tile_t:
        tile_t = max(8, _round_up(T, 8))
    T_pad = _round_up(T, tile_t)

    w_cat_np, fb_np, dct_t_np, n_freqs = _build_constants(
        n_fft, n_mels, n_mfcc, int(sample_rate), float(f_min), float(f_max), norm)
    fb = jnp.asarray(fb_np)
    dct_t = jnp.asarray(dct_t_np)
    two_f = 2 * n_freqs

    grid = (B, T_pad // tile_t)
    out_shape = jax.ShapeDtypeStruct((B, n_mfcc, T_pad), jnp.float32)
    out_spec = pl.BlockSpec((1, n_mfcc, tile_t), lambda b, t: (b, 0, t))

    def const_spec(shape):
        return pl.BlockSpec(shape, lambda b, t: (0, 0))

    rows = B * T_pad

    if n_fft == 2 * hop_length:
        # Split-DFT path: no frame materialisation / gather in HBM.
        total_samples = (T_pad + 1) * hop_length
        audio_p = jnp.pad(audio, ((0, 0), (0, total_samples - L)))
        chunks = audio_p.reshape(B, T_pad + 1, hop_length)
        chunks_a = chunks[:, :T_pad, :]
        chunks_b = chunks[:, 1:T_pad + 1, :]
        w_top = jnp.asarray(w_cat_np[:hop_length])
        w_bot = jnp.asarray(w_cat_np[hop_length:])

        kernel = _mfcc_kernel_split
        operands = (chunks_a, chunks_b, w_top, w_bot, fb, dct_t)
        in_specs = [
            pl.BlockSpec((1, tile_t, hop_length), lambda b, t: (b, t, 0)),
            pl.BlockSpec((1, tile_t, hop_length), lambda b, t: (b, t, 0)),
            const_spec((hop_length, two_f)),
            const_spec((hop_length, two_f)),
            const_spec((n_freqs, n_mels)),
            const_spec((n_mfcc, n_mels)),
        ]
        input_bytes = 2 * rows * hop_length * 4
    else:
        # General fallback: frame in the wrapper (gather), single fused DFT matmul.
        total_samples = n_fft + (T_pad - 1) * hop_length
        audio_p = jnp.pad(audio, ((0, 0), (0, total_samples - L)))
        starts = jnp.arange(T_pad) * hop_length
        idx = starts[:, None] + jnp.arange(n_fft)[None, :]
        frames = audio_p[:, idx]                          # (B, T_pad, n_fft)
        w_cat = jnp.asarray(w_cat_np)

        kernel = _mfcc_kernel_frames
        operands = (frames, w_cat, fb, dct_t)
        in_specs = [
            pl.BlockSpec((1, tile_t, n_fft), lambda b, t: (b, t, 0)),
            const_spec((n_fft, two_f)),
            const_spec((n_freqs, n_mels)),
            const_spec((n_mfcc, n_mels)),
        ]
        input_bytes = rows * n_fft * 4

    flops = rows * (2 * n_fft * two_f + 3 * n_freqs
                    + 2 * n_freqs * n_mels + n_mels
                    + 2 * n_mels * n_mfcc)
    weight_bytes = (n_fft * two_f + n_freqs * n_mels + n_mfcc * n_mels) * 4
    cost = pl.CostEstimate(
        flops=int(flops),
        transcendentals=int(rows * n_mels),
        bytes_accessed=int(input_bytes + weight_bytes + rows * n_mfcc * 4),
    )

    out = pl.pallas_call(
        kernel,
        out_shape=out_shape,
        grid_spec=pltpu.PrefetchScalarGridSpec(
            num_scalar_prefetch=0,
            grid=grid,
            in_specs=in_specs,
            out_specs=out_spec,
        ),
        compiler_params=pltpu.CompilerParams(
            dimension_semantics=("parallel", "parallel"),
            vmem_limit_bytes=48 * 1024 * 1024,
        ),
        cost_estimate=cost,
    )(*operands)

    # Already in PyTorch's (B, n_mfcc, T) layout; only crop the tiling pad.
    return out[:, :, :T]


# ---------------------------------------------------------------------------
# Pure-JAX reference (full n_freqs, gather framing) for a sanity check.
# ---------------------------------------------------------------------------
def mfcc_reference(audio, *, n_fft, hop_length, n_mels, n_mfcc,
                   sample_rate=16000, f_min=40.0, f_max=7600.0,
                   norm="ortho", pad_end=True):
    audio = audio.astype(jnp.float32)
    B, L = audio.shape
    if pad_end:
        remainder = (L - n_fft) % hop_length
        pad = 0 if remainder == 0 else hop_length - remainder
        if pad:
            audio = jnp.pad(audio, ((0, 0), (0, pad)))
        L = L + pad
    T = 1 + (L - n_fft) // hop_length
    starts = jnp.arange(T) * hop_length
    idx = starts[:, None] + jnp.arange(n_fft)[None, :]
    frames = audio[:, idx]                                 # (B, T, n_fft)
    n_freqs = n_fft // 2 + 1
    cos_np, sin_np = _make_dft_matrices(n_fft, n_freqs)
    fb = jnp.asarray(
        _make_mel_filterbank(n_freqs, f_min, f_max, n_mels, sample_rate).astype(np.float32))
    dct = jnp.asarray(_make_dct_matrix(n_mfcc, n_mels, norm).astype(np.float32))
    re = jnp.einsum("btn,nf->btf", frames, jnp.asarray(cos_np.astype(np.float32)))
    im = jnp.einsum("btn,nf->btf", frames, jnp.asarray(sin_np.astype(np.float32)))
    power = re * re + im * im
    mel = jnp.einsum("btf,fm->btm", power, fb)
    log_mel = jnp.log(mel + 1e-6)
    mfcc = jnp.einsum("btm,mk->btk", log_mel, dct)
    return jnp.transpose(mfcc, (0, 2, 1))


if __name__ == "__main__":
    # Small, module-consistent configuration: hop == n_fft/2 like the module's
    # 2048/1024 defaults; n_mels=128 / n_mfcc=40 are the module defaults.
    n_fft = 256
    hop_length = 128
    n_mels = 128
    n_mfcc = 40
    sample_rate = 16000
    f_min, f_max = 40.0, 7600.0

    B, L = 2, 2000          # pad_end pads to 2048 -> T = 15 frames
    key = jax.random.PRNGKey(0)
    audio = jax.random.normal(key, (B, L), dtype=jnp.float32)

    run = functools.partial(
        mfcc_pallas,
        n_fft=n_fft, hop_length=hop_length, n_mels=n_mels, n_mfcc=n_mfcc,
        sample_rate=sample_rate, f_min=f_min, f_max=f_max,
        norm="ortho", pad_end=True)
    out = jax.block_until_ready(run(audio))

    expected_T = 1 + ((L + (hop_length - (L - n_fft) % hop_length) % hop_length) - n_fft) // hop_length
    assert out.shape == (B, n_mfcc, expected_T), out.shape
    assert bool(jnp.all(jnp.isfinite(out)))

    ref = jax.block_until_ready(
        mfcc_reference(audio, n_fft=n_fft, hop_length=hop_length,
                       n_mels=n_mels, n_mfcc=n_mfcc, sample_rate=sample_rate,
                       f_min=f_min, f_max=f_max, norm="ortho", pad_end=True))
    np.testing.assert_allclose(np.asarray(out), np.asarray(ref), rtol=5e-2, atol=5e-2)

    print("KERNEL_OK")
</pallas_src>

<mosaic_0001>
module attributes {stable_mosaic.version = 11 : i64} {
  func.func @_mfcc_kernel_split(%arg0: i32, %arg1: i32, %arg2: memref<1x16x128xf32, #tpu.memory_space<vmem>>, %arg3: memref<1x16x128xf32, #tpu.memory_space<vmem>>, %arg4: memref<128x256xf32, #tpu.memory_space<vmem>>, %arg5: memref<128x256xf32, #tpu.memory_space<vmem>>, %arg6: memref<128x128xf32, #tpu.memory_space<vmem>>, %arg7: memref<40x128xf32, #tpu.memory_space<vmem>>, %arg8: memref<1x40x16xf32, #tpu.memory_space<vmem>>) attributes {dimension_semantics = [#tpu.dimension_semantics<parallel>, #tpu.dimension_semantics<parallel>], iteration_bounds = array<i64: 2, 1>, scalar_prefetch = 0 : i64, scratch_operands = 0 : i64, tpu.core_type = #tpu.core_type<tc>, window_params = [{transform_indices = @transform_0, window_bounds = array<i64: 1, 16, 128>}, {transform_indices = @transform_1, window_bounds = array<i64: 1, 16, 128>}, {pipeline_mode = #tpu.pipeline_mode<synchronous>, transform_indices = @transform_2, window_bounds = array<i64: 128, 256>}, {pipeline_mode = #tpu.pipeline_mode<synchronous>, transform_indices = @transform_3, window_bounds = array<i64: 128, 256>}, {pipeline_mode = #tpu.pipeline_mode<synchronous>, transform_indices = @transform_4, window_bounds = array<i64: 128, 128>}, {pipeline_mode = #tpu.pipeline_mode<synchronous>, transform_indices = @transform_5, window_bounds = array<i64: 40, 128>}, {transform_indices = @transform_6, window_bounds = array<i64: 1, 40, 16>}]} {
    %c0 = arith.constant 0 : index
    %c0_0 = arith.constant 0 : index
    %c0_1 = arith.constant 0 : index
    %0 = vector.load %arg2[%c0, %c0_0, %c0_1] : memref<1x16x128xf32, #tpu.memory_space<vmem>>, vector<1x16x128xf32>
    %1 = vector.shape_cast %0 : vector<1x16x128xf32> to vector<16x128xf32>
    %c0_2 = arith.constant 0 : index
    %c0_3 = arith.constant 0 : index
    %2 = vector.load %arg4[%c0_2, %c0_3] : memref<128x256xf32, #tpu.memory_space<vmem>>, vector<128x256xf32>
    %cst = arith.constant dense<0.000000e+00> : vector<16x256xf32>
    %3 = tpu.matmul %1, %2, %cst {dimension_numbers = #tpu.dot_dimension_numbers<[1], [0], [0], [1], [0, 0, 1, 1], [], []>} : vector<16x128xf32>, vector<128x256xf32>, vector<16x256xf32> -> vector<16x256xf32>
    %c0_4 = arith.constant 0 : index
    %c0_5 = arith.constant 0 : index
    %c0_6 = arith.constant 0 : index
    %4 = vector.load %arg3[%c0_4, %c0_5, %c0_6] : memref<1x16x128xf32, #tpu.memory_space<vmem>>, vector<1x16x128xf32>
    %5 = vector.shape_cast %4 : vector<1x16x128xf32> to vector<16x128xf32>
    %c0_7 = arith.constant 0 : index
    %c0_8 = arith.constant 0 : index
    %6 = vector.load %arg5[%c0_7, %c0_8] : memref<128x256xf32, #tpu.memory_space<vmem>>, vector<128x256xf32>
    %cst_9 = arith.constant dense<0.000000e+00> : vector<16x256xf32>
    %7 = tpu.matmul %5, %6, %cst_9 {dimension_numbers = #tpu.dot_dimension_numbers<[1], [0], [0], [1], [0, 0, 1, 1], [], []>} : vector<16x128xf32>, vector<128x256xf32>, vector<16x256xf32> -> vector<16x256xf32>
    %8 = arith.addf %3, %7 : vector<16x256xf32>
    %9 = vector.extract_strided_slice %8 {offsets = [0, 0], sizes = [16, 128], strides = [1, 1]} : vector<16x256xf32> to vector<16x128xf32>
    %10 = vector.extract_strided_slice %8 {offsets = [0, 128], sizes = [16, 128], strides = [1, 1]} : vector<16x256xf32> to vector<16x128xf32>
    %11 = arith.mulf %9, %9 : vector<16x128xf32>
    %12 = arith.mulf %10, %10 : vector<16x128xf32>
    %13 = arith.addf %11, %12 : vector<16x128xf32>
    %c0_10 = arith.constant 0 : index
    %c0_11 = arith.constant 0 : index
    %14 = vector.load %arg6[%c0_10, %c0_11] : memref<128x128xf32, #tpu.memory_space<vmem>>, vector<128x128xf32>
    %cst_12 = arith.constant dense<0.000000e+00> : vector<16x128xf32>
    %15 = tpu.matmul %13, %14, %cst_12 {dimension_numbers = #tpu.dot_dimension_numbers<[1], [0], [0], [1], [0, 0, 1, 1], [], []>} : vector<16x128xf32>, vector<128x128xf32>, vector<16x128xf32> -> vector<16x128xf32>
    %cst_13 = arith.constant 9.99999997E-7 : f32
    %16 = vector.broadcast %cst_13 : f32 to vector<16x128xf32>
    %17 = arith.addf %15, %16 : vector<16x128xf32>
    %18 = math.log %17 : vector<16x128xf32>
    %c0_14 = arith.constant 0 : index
    %c0_15 = arith.constant 0 : index
    %19 = vector.load %arg7[%c0_14, %c0_15] : memref<40x128xf32, #tpu.memory_space<vmem>>, vector<40x128xf32>
    %20 = tpu.transpose %18, [1, 0] : vector<16x128xf32> -> vector<128x16xf32>
    %cst_16 = arith.constant dense<0.000000e+00> : vector<40x16xf32>
    %21 = tpu.matmul %19, %20, %cst_16 {dimension_numbers = #tpu.dot_dimension_numbers<[1], [0], [0], [1], [0, 0, 1, 1], [], []>} : vector<40x128xf32>, vector<128x16xf32>, vector<40x16xf32> -> vector<40x16xf32>
    %c0_17 = arith.constant 0 : index
    %c0_18 = arith.constant 0 : index
    %c0_19 = arith.constant 0 : index
    %22 = vector.load %arg8[%c0_17, %c0_18, %c0_19] : memref<1x40x16xf32, #tpu.memory_space<vmem>>, vector<1x40x16xf32>
    %23 = vector.shape_cast %22 : vector<1x40x16xf32> to vector<40x16xf32>
    %24 = vector.shape_cast %21 : vector<40x16xf32> to vector<1x40x16xf32>
    tpu.vector_store %arg8[%c0_17, %c0_18, %c0_19], %24 {strides = array<i32>} : memref<1x40x16xf32, #tpu.memory_space<vmem>>, vector<1x40x16xf32>,
    return
  }
  func.func @transform_0(%arg0: i32, %arg1: i32) -> (i32, i32, i32) {
    %c0_i32 = arith.constant 0 : i32
    %c0_i32_0 = arith.constant 0 : i32
    return %arg0, %arg1, %c0_i32 : i32, i32, i32
  }
  func.func @transform_1(%arg0: i32, %arg1: i32) -> (i32, i32, i32) {
    %c0_i32 = arith.constant 0 : i32
    %c0_i32_0 = arith.constant 0 : i32
    return %arg0, %arg1, %c0_i32 : i32, i32, i32
  }
  func.func @transform_2(%arg0: i32, %arg1: i32) -> (i32, i32) {
    %c0_i32 = arith.constant 0 : i32
    %c0_i32_0 = arith.constant 0 : i32
    %c0_i32_1 = arith.constant 0 : i32
    return %c0_i32, %c0_i32_0 : i32, i32
  }
  func.func @transform_3(%arg0: i32, %arg1: i32) -> (i32, i32) {
    %c0_i32 = arith.constant 0 : i32
    %c0_i32_0 = arith.constant 0 : i32
    %c0_i32_1 = arith.constant 0 : i32
    return %c0_i32, %c0_i32_0 : i32, i32
  }
  func.func @transform_4(%arg0: i32, %arg1: i32) -> (i32, i32) {
    %c0_i32 = arith.constant 0 : i32
    %c0_i32_0 = arith.constant 0 : i32
    %c0_i32_1 = arith.constant 0 : i32
    return %c0_i32, %c0_i32_0 : i32, i32
  }
  func.func @transform_5(%arg0: i32, %arg1: i32) -> (i32, i32) {
    %c0_i32 = arith.constant 0 : i32
    %c0_i32_0 = arith.constant 0 : i32
    %c0_i32_1 = arith.constant 0 : i32
    return %c0_i32, %c0_i32_0 : i32, i32
  }
  func.func @transform_6(%arg0: i32, %arg1: i32) -> (i32, i32, i32) {
    %c0_i32 = arith.constant 0 : i32
    %c0_i32_0 = arith.constant 0 : i32
    return %arg0, %c0_i32, %arg1 : i32, i32, i32
  }
}

</mosaic_0001>

<llo_original>
// kernel: tpu_custom_call.1
$region0: #{tpu_custom_call.1}
  #allocation0 [shape = 'u32[]', space=smem, size = 0x4, offset = 0x4, fixed_abs, tag = 'smem constant byte address 0x4 - core index']
  #allocation1 [shape = 'u32[144,128]{1,0:T(1,128)}', space=vmem, size = 0x12000, scoped, tag = 'internal scratch']
  %s0 = inlined_call_operand.hbm [shape: f32[2,16,128], index: 0, kind: input, shape index: {}]
  %s1 = inlined_call_operand.hbm [shape: f32[2,16,128], index: 1, kind: input, shape index: {}]
  %s2 = inlined_call_operand.hbm [shape: f32[128,256], index: 2, kind: input, shape index: {}]
  %s3 = inlined_call_operand.hbm [shape: f32[128,256], index: 3, kind: input, shape index: {}]
  %s4 = inlined_call_operand.hbm [shape: f32[128,128], index: 4, kind: input, shape index: {}]
  %s5 = inlined_call_operand.hbm [shape: f32[40,128], index: 5, kind: input, shape index: {}]
  %s6 = inlined_call_operand.vmem [shape: f32[2,40,16], index: 6, kind: output, shape index: {}]
  %s7 = sld [smem:[#allocation0]]
  $region81: #{tpu_custom_call.1} parent=0
    _
  %s9 = ssub.s32 1, %s7
  %s10 = scalar_select 0, %s9, %s7
  $region1: #{tpu_custom_call.1} parent=0
    #allocation2 [shape = 'u8[16384]{0}', space=vmem, size = 0x4000, scoped, tag = 'input window, operand 0']
    #allocation3 [shape = 's32[2]{0}', space=sflag, size = 0x8, scoped, tag = 'scoped memory for tpu_custom_call.1']
    #allocation4 [shape = 'u8[16384]{0}', space=vmem, size = 0x4000, scoped, tag = 'input window, operand 1']
    #allocation5 [shape = 's32[2]{0}', space=sflag, size = 0x8, scoped, tag = 'scoped memory for tpu_custom_call.1']
    #allocation6 [shape = 'u8[131072]{0}', space=vmem, size = 0x20000, scoped, tag = 'input window, operand 2, single buffered']
    #allocation7 [shape = 'u8[131072]{0}', space=vmem, size = 0x20000, scoped, tag = 'input window, operand 3, single buffered']
    #allocation8 [shape = 's32[1]{0}', space=sflag, size = 0x4, scoped, tag = 'scoped memory for tpu_custom_call.1']
    #allocation9 [shape = 'u8[65536]{0}', space=vmem, size = 0x10000, scoped, tag = 'input window, operand 4, single buffered']
    #allocation10 [shape = 'u8[20480]{0}', space=vmem, size = 0x5000, scoped, tag = 'input window, operand 5, single buffered']
    #allocation11 [shape = 's32[1]{0}', space=sflag, size = 0x4, scoped, tag = 'scoped memory for tpu_custom_call.1']
    %11 = vsyncpa [#allocation3], 0
    %s12 = scalar_lea.sflag [#allocation3], 1
    %13 = vsyncpa %s12, 0
    %14 = vsyncpa [#allocation5], 0
    %s15 = scalar_lea.sflag [#allocation5], 1
    %16 = vsyncpa %s15, 0
    %17 = vsyncpa [#allocation8], 0
    %18 = vsyncpa [#allocation11], 0
    loop: start=0, step=1, limit=4
    $region2: #{tpu_custom_call.1} parent=1 // loop_pre_header
      _
    $region3: #{tpu_custom_call.1} parent=1 // loop_header
      %s20 = sphi 0, %s24
      %p21 = scmp.ge.s32.totalorder %s20, 4
      %s27 = sphi 0, %s39
      %s28 = sphi 0, %s35
      %s29 = sphi 0, %s27
      %s30 = sphi 0, %s28
      %s31 = sphi 0, %s29
      %s32 = sphi 0, %s30
      %s44 = sphi 0, %s46
      %s47 = sphi 0, %s44
      %s48 = sphi 0, %s47
      %s64 = sphi 0, %s48
      %s72 = sphi 0, %s74
      %s75 = sphi 0, %s72
      %s76 = sphi 0, %s75
      %s92 = sphi 0, %s76
      %s96 = sphi 0, %s96
      %s98 = sphi 0, %s96
      %s99 = sphi 0, %s98
      %s113 = sphi 0, %s99
      %s117 = sphi 0, %s117
      %s119 = sphi 0, %s117
      %s120 = sphi 0, %s119
      %s134 = sphi 0, %s120
      %s138 = sphi 0, %s138
      %s140 = sphi 0, %s138
      %s141 = sphi 0, %s140
      %s155 = sphi 0, %s141
      %s159 = sphi 0, %s159
      %s161 = sphi 0, %s159
      %s162 = sphi 0, %s161
      %s176 = sphi 0, %s162
      %s184 = sphi 0, %s186
      %s187 = sphi 0, %s184
      %s188 = sphi 0, %s187
      %s204 = sphi 0, %s188
    $region4: #{tpu_custom_call.1} parent=1 // loop_header_branch
      %23 = sbr.rel (%p21) target = $region8
    $region5: #{tpu_custom_call.1} parent=1 // loop_body
      %s25 = ssub.s32 %s20, 1
      %s26 = ssub.s32 %s20, 2
      %s33 = sadd.s32 1, %s28
      %p34 = scmp.ge.s32.totalorder %s33, 1
      %s35 = scalar_select %p34, 0, %s33
      %s36 = sadd.s32 1, %s27
      %s37 = scalar_select %p34, %s36, %s27
      %p38 = scmp.ge.s32.totalorder %s37, 2
      %s39 = scalar_select %p38, 0, %s37
      %s40 = ssub.s32 %s27, %s39
      %s41 = ssub.s32 %s28, %s35
      %s42 = sor.u32 %s40, %s41
      %p43 = scmp.eq.s32.totalorder %s42, 0
      %s45 = sadd.s32 %s44, 1
      %s46 = scalar_select %p43, %s44, %s45
      %p49 = pneg %p43
      %p50 = scmp.eq.s32.totalorder %s20, 1
      %p51 = por %p49, %p50
      %p52 = scmp.ne.s32.totalorder %s44, %s47
      %p53 = scmp.eq.s32.totalorder %s20, 0
      %p54 = por %p52, %p53
      %p55 = scmp.ne.s32.totalorder %s44, %s47
      %p56 = scmp.eq.s32.totalorder %s25, 1
      %p57 = por %p55, %p56
      %p58 = scmp.ne.s32.totalorder %s47, %s48
      %p59 = scmp.eq.s32.totalorder %s25, 0
      %p60 = por %p58, %p59
      %p61 = scmp.ne.s32.totalorder %s47, %s48
      %p62 = scmp.eq.s32.totalorder %s26, 1
      %p63 = por %p61, %p62
      %p65 = scmp.ne.s32.totalorder %s48, %s64
      %p66 = scmp.eq.s32.totalorder %s26, 0
      %p67 = por %p65, %p66
      %s68 = ssub.s32 %s27, %s39
      %s69 = ssub.s32 %s28, %s35
      %s70 = sor.u32 %s68, %s69
      %p71 = scmp.eq.s32.totalorder %s70, 0
      %s73 = sadd.s32 %s72, 1
      %s74 = scalar_select %p71, %s72, %s73
      %p77 = pneg %p71
      %p78 = scmp.eq.s32.totalorder %s20, 1
      %p79 = por %p77, %p78
      %p80 = scmp.ne.s32.totalorder %s72, %s75
      %p81 = scmp.eq.s32.totalorder %s20, 0
      %p82 = por %p80, %p81
      %p83 = scmp.ne.s32.totalorder %s72, %s75
      %p84 = scmp.eq.s32.totalorder %s25, 1
      %p85 = por %p83, %p84
      %p86 = scmp.ne.s32.totalorder %s75, %s76
      %p87 = scmp.eq.s32.totalorder %s25, 0
      %p88 = por %p86, %p87
      %p89 = scmp.ne.s32.totalorder %s75, %s76
      %p90 = scmp.eq.s32.totalorder %s26, 1
      %p91 = por %p89, %p90
      %p93 = scmp.ne.s32.totalorder %s76, %s92
      %p94 = scmp.eq.s32.totalorder %s26, 0
      %p95 = por %p93, %p94
      %s97 = sadd.s32 %s96, 1
      %p100 = scmp.eq.s32.totalorder %s20, 1
      %p101 = scmp.ne.s32.totalorder %s96, %s98
      %p102 = scmp.eq.s32.totalorder %s20, 0
      %p103 = por %p101, %p102
      %p104 = scmp.ne.s32.totalorder %s96, %s98
      %p105 = scmp.eq.s32.totalorder %s25, 1
      %p106 = por %p104, %p105
      %p107 = scmp.ne.s32.totalorder %s98, %s99
      %p108 = scmp.eq.s32.totalorder %s25, 0
      %p109 = por %p107, %p108
      %p110 = scmp.ne.s32.totalorder %s98, %s99
      %p111 = scmp.eq.s32.totalorder %s26, 1
      %p112 = por %p110, %p111
      %p114 = scmp.ne.s32.totalorder %s99, %s113
      %p115 = scmp.eq.s32.totalorder %s26, 0
      %p116 = por %p114, %p115
      %s118 = sadd.s32 %s117, 1
      %p121 = scmp.eq.s32.totalorder %s20, 1
      %p122 = scmp.ne.s32.totalorder %s117, %s119
      %p123 = scmp.eq.s32.totalorder %s20, 0
      %p124 = por %p122, %p123
      %p125 = scmp.ne.s32.totalorder %s117, %s119
      %p126 = scmp.eq.s32.totalorder %s25, 1
      %p127 = por %p125, %p126
      %p128 = scmp.ne.s32.totalorder %s119, %s120
      %p129 = scmp.eq.s32.totalorder %s25, 0
      %p130 = por %p128, %p129
      %p131 = scmp.ne.s32.totalorder %s119, %s120
      %p132 = scmp.eq.s32.totalorder %s26, 1
      %p133 = por %p131, %p132
      %p135 = scmp.ne.s32.totalorder %s120, %s134
      %p136 = scmp.eq.s32.totalorder %s26, 0
      %p137 = por %p135, %p136
      %s139 = sadd.s32 %s138, 1
      %p142 = scmp.eq.s32.totalorder %s20, 1
      %p143 = scmp.ne.s32.totalorder %s138, %s140
      %p144 = scmp.eq.s32.totalorder %s20, 0
      %p145 = por %p143, %p144
      %p146 = scmp.ne.s32.totalorder %s138, %s140
      %p147 = scmp.eq.s32.totalorder %s25, 1
      %p148 = por %p146, %p147
      %p149 = scmp.ne.s32.totalorder %s140, %s141
      %p150 = scmp.eq.s32.totalorder %s25, 0
      %p151 = por %p149, %p150
      %p152 = scmp.ne.s32.totalorder %s140, %s141
      %p153 = scmp.eq.s32.totalorder %s26, 1
      %p154 = por %p152, %p153
      %p156 = scmp.ne.s32.totalorder %s141, %s155
      %p157 = scmp.eq.s32.totalorder %s26, 0
      %p158 = por %p156, %p157
      %s160 = sadd.s32 %s159, 1
      %p163 = scmp.eq.s32.totalorder %s20, 1
      %p164 = scmp.ne.s32.totalorder %s159, %s161
      %p165 = scmp.eq.s32.totalorder %s20, 0
      %p166 = por %p164, %p165
      %p167 = scmp.ne.s32.totalorder %s159, %s161
      %p168 = scmp.eq.s32.totalorder %s25, 1
      %p169 = por %p167, %p168
      %p170 = scmp.ne.s32.totalorder %s161, %s162
      %p171 = scmp.eq.s32.totalorder %s25, 0
      %p172 = por %p170, %p171
      %p173 = scmp.ne.s32.totalorder %s161, %s162
      %p174 = scmp.eq.s32.totalorder %s26, 1
      %p175 = por %p173, %p174
      %p177 = scmp.ne.s32.totalorder %s162, %s176
      %p178 = scmp.eq.s32.totalorder %s26, 0
      %p179 = por %p177, %p178
      %s180 = ssub.s32 %s27, %s39
      %s181 = ssub.s32 %s28, %s35
      %s182 = sor.u32 %s180, %s181
      %p183 = scmp.eq.s32.totalorder %s182, 0
      %s185 = sadd.s32 %s184, 1
      %s186 = scalar_select %p183, %s184, %s185
      %p189 = pneg %p183
      %p190 = scmp.eq.s32.totalorder %s20, 1
      %p191 = por %p189, %p190
      %p192 = scmp.ne.s32.totalorder %s184, %s187
      %p193 = scmp.eq.s32.totalorder %s20, 0
      %p194 = por %p192, %p193
      %p195 = scmp.ne.s32.totalorder %s184, %s187
      %p196 = scmp.eq.s32.totalorder %s25, 1
      %p197 = por %p195, %p196
      %p198 = scmp.ne.s32.totalorder %s187, %s188
      %p199 = scmp.eq.s32.totalorder %s25, 0
      %p200 = por %p198, %p199
      %p201 = scmp.ne.s32.totalorder %s187, %s188
      %p202 = scmp.eq.s32.totalorder %s26, 1
      %p203 = por %p201, %p202
      %p205 = scmp.ne.s32.totalorder %s188, %s204
      %p206 = scmp.eq.s32.totalorder %s26, 0
      %p207 = por %p205, %p206
      %p208 = scmp.le.s32.totalorder 1, %s20
      %p209 = scmp.lt.s32.totalorder %s20, 3
      %p210 = pnand %p208, %p209
      %p211 = pneg %p210
      // Predicated region
      $region9: #{tpu_custom_call.1} parent=5 // pred_check
        _
      $region10: #{tpu_custom_call.1} parent=5 // pred_check_branch
        %213 = sbr.rel (%p210) target = $region12
      $region11: #{tpu_custom_call.1} parent=5 // pred_region
        %s214 = ssub.s32 %s20, 1
        // Predicated region
        $region13: #{tpu_custom_call.1} parent=11 // pred_check
          %p215 = pneg %p109
        $region14: #{tpu_custom_call.1} parent=11 // pred_check_branch
          %217 = sbr.rel (%p215) target = $region16
        $region15: #{tpu_custom_call.1} parent=11 // pred_region
          %s219 = ssub.s32 4096, 4096
          %220 = vsyncadd [#allocation5], %s219
          %s221 = sshll.u32 [#allocation6], 4
          %s222 = int_to_ptr.vmem [resolvable:$true] %s221
          %227 = dma.hbm_to_vmem [thread:$0]  %s2, 4096, %s222, [#allocation5], 256, 256, 16
        $region16: #{tpu_custom_call.1} parent=11 // pred_fallthru
          _
        // Predicated region
        $region17: #{tpu_custom_call.1} parent=11 // pred_check
          %p228 = pneg %p130
        $region18: #{tpu_custom_call.1} parent=11 // pred_check_branch
          %230 = sbr.rel (%p228) target = $region20
        $region19: #{tpu_custom_call.1} parent=11 // pred_region
          %s232 = ssub.s32 4096, 4096
          %233 = vsyncadd [#allocation8], %s232
          %s234 = sshll.u32 [#allocation7], 4
          %s235 = int_to_ptr.vmem [resolvable:$true] %s234
          %240 = dma.hbm_to_vmem [thread:$0]  %s3, 4096, %s235, [#allocation8], 256, 256, 16
        $region20: #{tpu_custom_call.1} parent=11 // pred_fallthru
          _
        // Predicated region
        $region21: #{tpu_custom_call.1} parent=11 // pred_check
          %p241 = pneg %p151
        $region22: #{tpu_custom_call.1} parent=11 // pred_check_branch
          %243 = sbr.rel (%p241) target = $region24
        $region23: #{tpu_custom_call.1} parent=11 // pred_region
          %s245 = ssub.s32 2048, 2048
          %246 = vsyncadd [#allocation8], %s245
          %s247 = sshll.u32 [#allocation9], 4
          %s248 = int_to_ptr.vmem [resolvable:$true] %s247
          %253 = dma.hbm_to_vmem [thread:$0]  %s4, 2048, %s248, [#allocation8], 128, 128, 8
        $region24: #{tpu_custom_call.1} parent=11 // pred_fallthru
          _
        // Predicated region
        $region25: #{tpu_custom_call.1} parent=11 // pred_check
          %p254 = pneg %p172
        $region26: #{tpu_custom_call.1} parent=11 // pred_check_branch
          %256 = sbr.rel (%p254) target = $region28
        $region27: #{tpu_custom_call.1} parent=11 // pred_region
          %s258 = ssub.s32 640, 640
          %259 = vsyncadd [#allocation11], %s258
          %s260 = sshll.u32 [#allocation10], 4
          %s261 = int_to_ptr.vmem [resolvable:$true] %s260
          %266 = dma.hbm_to_vmem [thread:$0]  %s5, 640, %s261, [#allocation11], 128, 128, 8
        $region28: #{tpu_custom_call.1} parent=11 // pred_fallthru
          _
      $region12: #{tpu_custom_call.1} parent=5 // pred_fallthru
        _
      %p267 = scmp.lt.s32.totalorder %s20, 2
      // Predicated region
      $region29: #{tpu_custom_call.1} parent=5 // pred_check
        %p268 = pneg %p267
      $region30: #{tpu_custom_call.1} parent=5 // pred_check_branch
        %270 = sbr.rel (%p268) target = $region32
      $region31: #{tpu_custom_call.1} parent=5 // pred_region
        // Predicated region
        $region33: #{tpu_custom_call.1} parent=31 // pred_check
          %p271 = pneg %p54
        $region34: #{tpu_custom_call.1} parent=31 // pred_check_branch
          %273 = sbr.rel (%p271) target = $region36
        $region35: #{tpu_custom_call.1} parent=31 // pred_region
          %s274 = sand.u32 %s44, 1
          %s275 = scalar_lea.sflag [#allocation3], %s274
          %s276 = sand.u32 %s44, 1
          %s277 = smul.addr %s276, 16
          %s278 = scalar_lea.vmem [#allocation2], %s277
          %s279 = smul.u32 2, %s28
          %s281 = ssub.s32 256, 256
          %282 = vsyncadd %s275, %s281
          %s283 = smul.addr %s27, 2
          %s284 = sadd.s32 %s279, %s283
          %s285 = smul.addr %s284, 128
          %s286 = scalar_lea.hbm %s0, %s285
          %s287 = sshll.u32 %s278, 4
          %s288 = int_to_ptr.vmem [resolvable:$true] %s287
          %293 = dma.hbm_to_vmem [thread:$0]  %s286, 256, %s288, %s275, 128, 128, 8
        $region36: #{tpu_custom_call.1} parent=31 // pred_fallthru
          _
        // Predicated region
        $region37: #{tpu_custom_call.1} parent=31 // pred_check
          %p294 = pneg %p82
        $region38: #{tpu_custom_call.1} parent=31 // pred_check_branch
          %296 = sbr.rel (%p294) target = $region40
        $region39: #{tpu_custom_call.1} parent=31 // pred_region
          %s297 = sand.u32 %s20, 1
          %s298 = scalar_lea.sflag [#allocation5], %s297
          %s299 = sand.u32 %s72, 1
          %s300 = smul.addr %s299, 16
          %s301 = scalar_lea.vmem [#allocation4], %s300
          %s302 = smul.u32 2, %s28
          %s304 = ssub.s32 256, 256
          %305 = vsyncadd %s298, %s304
          %s306 = smul.addr %s27, 2
          %s307 = sadd.s32 %s302, %s306
          %s308 = smul.addr %s307, 128
          %s309 = scalar_lea.hbm %s1, %s308
          %s310 = sshll.u32 %s301, 4
          %s311 = int_to_ptr.vmem [resolvable:$true] %s310
          %316 = dma.hbm_to_vmem [thread:$0]  %s309, 256, %s311, %s298, 128, 128, 8
        $region40: #{tpu_custom_call.1} parent=31 // pred_fallthru
          _
      $region32: #{tpu_custom_call.1} parent=5 // pred_fallthru
        _
      %p317 = scmp.le.s32.totalorder 1, %s20
      %p318 = scmp.lt.s32.totalorder %s20, 3
      %p319 = pnand %p317, %p318
      %p320 = pneg %p319
      // Predicated region
      $region41: #{tpu_custom_call.1} parent=5 // pred_check
        _
      $region42: #{tpu_custom_call.1} parent=5 // pred_check_branch
        %322 = sbr.rel (%p319) target = $region44
      $region43: #{tpu_custom_call.1} parent=5 // pred_region
        %s323 = ssub.s32 %s20, 1
        %s324 = sand.u32 %s47, 1
        %s325 = scalar_lea.sflag [#allocation3], %s324
        %s326 = sand.u32 %s47, 1
        %s327 = smul.addr %s326, 16
        %s328 = scalar_lea.vmem [#allocation2], %s327
        // Predicated region
        $region45: #{tpu_custom_call.1} parent=43 // pred_check
          %p329 = pneg %p60
        $region46: #{tpu_custom_call.1} parent=43 // pred_check_branch
          %331 = sbr.rel (%p329) target = $region48
        $region47: #{tpu_custom_call.1} parent=43 // pred_region
          %332 = dma.done %s325, 256
        $region48: #{tpu_custom_call.1} parent=43 // pred_fallthru
          _
        %s333 = sand.u32 %s25, 1
        %s334 = scalar_lea.sflag [#allocation5], %s333
        %s335 = sand.u32 %s75, 1
        %s336 = smul.addr %s335, 16
        %s337 = scalar_lea.vmem [#allocation4], %s336
        // Predicated region
        $region49: #{tpu_custom_call.1} parent=43 // pred_check
          %p338 = pneg %p88
        $region50: #{tpu_custom_call.1} parent=43 // pred_check_branch
          %340 = sbr.rel (%p338) target = $region52
        $region51: #{tpu_custom_call.1} parent=43 // pred_region
          %341 = dma.done %s334, 256
        $region52: #{tpu_custom_call.1} parent=43 // pred_fallthru
          _
        // Predicated region
        $region53: #{tpu_custom_call.1} parent=43 // pred_check
          %p342 = pneg %p109
        $region54: #{tpu_custom_call.1} parent=43 // pred_check_branch
          %344 = sbr.rel (%p342) target = $region56
        $region55: #{tpu_custom_call.1} parent=43 // pred_region
          %345 = dma.done [#allocation5], 4096
        $region56: #{tpu_custom_call.1} parent=43 // pred_fallthru
          _
        // Predicated region
        $region57: #{tpu_custom_call.1} parent=43 // pred_check
          %p346 = pneg %p130
        $region58: #{tpu_custom_call.1} parent=43 // pred_check_branch
          %348 = sbr.rel (%p346) target = $region60
        $region59: #{tpu_custom_call.1} parent=43 // pred_region
          %349 = dma.done [#allocation8], 4096
        $region60: #{tpu_custom_call.1} parent=43 // pred_fallthru
          _
        // Predicated region
        $region61: #{tpu_custom_call.1} parent=43 // pred_check
          %p350 = pneg %p151
        $region62: #{tpu_custom_call.1} parent=43 // pred_check_branch
          %352 = sbr.rel (%p350) target = $region64
        $region63: #{tpu_custom_call.1} parent=43 // pred_region
          %353 = dma.done [#allocation8], 2048
        $region64: #{tpu_custom_call.1} parent=43 // pred_fallthru
          _
        // Predicated region
        $region65: #{tpu_custom_call.1} parent=43 // pred_check
          %p354 = pneg %p172
        $region66: #{tpu_custom_call.1} parent=43 // pred_check_branch
          %356 = sbr.rel (%p354) target = $region68
        $region67: #{tpu_custom_call.1} parent=43 // pred_region
          %357 = dma.done [#allocation11], 640
        $region68: #{tpu_custom_call.1} parent=43 // pred_fallthru
          _
        %s358 = sand.u32 %s47, 1
        %s359 = scalar_lea.sflag [#allocation3], %s358
        %s360 = sand.u32 %s47, 1
        %s361 = smul.addr %s360, 16
        %s362 = scalar_lea.vmem [#allocation2], %s361
        %p363 = pneg %p60
        %p364 = pneg %p57
        %s365 = sand.u32 %s25, 1
        %s366 = scalar_lea.sflag [#allocation5], %s365
        %s367 = sand.u32 %s75, 1
        %s368 = smul.addr %s367, 16
        %s369 = scalar_lea.vmem [#allocation4], %s368
        %p370 = pneg %p88
        %p371 = pneg %p85
        %p372 = pneg %p109
        %p373 = pneg %p106
        %p374 = pneg %p130
        %p375 = pneg %p127
        %p376 = pneg %p151
        %p377 = pneg %p148
        %p378 = pneg %p172
        %p379 = pneg %p169
        %p380 = pneg %p200
        %p381 = pneg %p197
        %p382 = scmp.lt.s32.totalorder %s29, 1
        %s383 = scalar_select %p382, %s29, 1
        %p384 = scmp.lt.s32.totalorder %s30, 0
        %s385 = scalar_select %p384, %s30, 0
        %s386 = smul.addr %s383, 5
        %s387 = sadd.s32 %s385, %s386
        %s388 = smul.addr %s387, 8
        %s389 = scalar_lea.vmem %s6, %s388
        %s390 = smul.u32 2, %s30
        %s391 = smul.u32 2, %s30
        %p392 = scmp.lt.s32.totalorder %s29, 1
        %s393 = scalar_select %p392, %s29, 1
        %p394 = scmp.lt.s32.totalorder %s30, 0
        %s395 = scalar_select %p394, %s30, 0
        %s396 = smul.addr %s393, 5
        %s397 = sadd.s32 %s395, %s396
        %s398 = smul.addr %s397, 8
        %s399 = scalar_lea.vmem %s6, %s398
        %v400 = vld [vmem:[%s328] sm:$0xff]
        %v401 = vld [vmem:[%s328 + $0x8] sm:$0xff]
        %v402 = vld [vmem:[#allocation6] sm:$0xff]
        %v403 = vld [vmem:[#allocation6 + $0x8] sm:$0xff]
        %v404 = vld [vmem:[#allocation6 + $0x10] sm:$0xff]
        %v405 = vld [vmem:[#allocation6 + $0x18] sm:$0xff]
        %v406 = vld [vmem:[#allocation6 + $0x20] sm:$0xff]
        %v407 = vld [vmem:[#allocation6 + $0x28] sm:$0xff]
        %v408 = vld [vmem:[#allocation6 + $0x30] sm:$0xff]
        %v409 = vld [vmem:[#allocation6 + $0x38] sm:$0xff]
        %v410 = vld [vmem:[#allocation6 + $0x40] sm:$0xff]
        %v411 = vld [vmem:[#allocation6 + $0x48] sm:$0xff]
        %v412 = vld [vmem:[#allocation6 + $0x50] sm:$0xff]
        %v413 = vld [vmem:[#allocation6 + $0x58] sm:$0xff]
        %v414 = vld [vmem:[#allocation6 + $0x60] sm:$0xff]
        %v415 = vld [vmem:[#allocation6 + $0x68] sm:$0xff]
        %v416 = vld [vmem:[#allocation6 + $0x70] sm:$0xff]
        %v417 = vld [vmem:[#allocation6 + $0x78] sm:$0xff]
        %v418 = vld [vmem:[#allocation6 + $0x80] sm:$0xff]
        %v419 = vld [vmem:[#allocation6 + $0x88] sm:$0xff]
        %v420 = vld [vmem:[#allocation6 + $0x90] sm:$0xff]
        %v421 = vld [vmem:[#allocation6 + $0x98] sm:$0xff]
        %v422 = vld [vmem:[#allocation6 + $0xa0] sm:$0xff]
        %v423 = vld [vmem:[#allocation6 + $0xa8] sm:$0xff]
        %v424 = vld [vmem:[#allocation6 + $0xb0] sm:$0xff]
        %v425 = vld [vmem:[#allocation6 + $0xb8] sm:$0xff]
        %v426 = vld [vmem:[#allocation6 + $0xc0] sm:$0xff]
        %v427 = vld [vmem:[#allocation6 + $0xc8] sm:$0xff]
        %v428 = vld [vmem:[#allocation6 + $0xd0] sm:$0xff]
        %v429 = vld [vmem:[#allocation6 + $0xd8] sm:$0xff]
        %v430 = vld [vmem:[#allocation6 + $0xe0] sm:$0xff]
        %v431 = vld [vmem:[#allocation6 + $0xe8] sm:$0xff]
        %v432 = vld [vmem:[#allocation6 + $0xf0] sm:$0xff]
        %v433 = vld [vmem:[#allocation6 + $0xf8] sm:$0xff]
        %v434 = vld [vmem:[%s337] sm:$0xff]
        %v435 = vld [vmem:[%s337 + $0x8] sm:$0xff]
        %v436 = vld [vmem:[#allocation7] sm:$0xff]
        %v437 = vld [vmem:[#allocation7 + $0x8] sm:$0xff]
        %v438 = vld [vmem:[#allocation7 + $0x10] sm:$0xff]
        %v439 = vld [vmem:[#allocation7 + $0x18] sm:$0xff]
        %v440 = vld [vmem:[#allocation7 + $0x20] sm:$0xff]
        %v441 = vld [vmem:[#allocation7 + $0x28] sm:$0xff]
        %v442 = vld [vmem:[#allocation7 + $0x30] sm:$0xff]
        %v443 = vld [vmem:[#allocation7 + $0x38] sm:$0xff]
        %v444 = vld [vmem:[#allocation7 + $0x40] sm:$0xff]
        %v445 = vld [vmem:[#allocation7 + $0x48] sm:$0xff]
        %v446 = vld [vmem:[#allocation7 + $0x50] sm:$0xff]
        %v447 = vld [vmem:[#allocation7 + $0x58] sm:$0xff]
        %v448 = vld [vmem:[#allocation7 + $0x60] sm:$0xff]
        %v449 = vld [vmem:[#allocation7 + $0x68] sm:$0xff]
        %v450 = vld [vmem:[#allocation7 + $0x70] sm:$0xff]
        %v451 = vld [vmem:[#allocation7 + $0x78] sm:$0xff]
        %v452 = vld [vmem:[#allocation7 + $0x80] sm:$0xff]
        %v453 = vld [vmem:[#allocation7 + $0x88] sm:$0xff]
        %v454 = vld [vmem:[#allocation7 + $0x90] sm:$0xff]
        %v455 = vld [vmem:[#allocation7 + $0x98] sm:$0xff]
        %v456 = vld [vmem:[#allocation7 + $0xa0] sm:$0xff]
        %v457 = vld [vmem:[#allocation7 + $0xa8] sm:$0xff]
        %v458 = vld [vmem:[#allocation7 + $0xb0] sm:$0xff]
        %v459 = vld [vmem:[#allocation7 + $0xb8] sm:$0xff]
        %v460 = vld [vmem:[#allocation7 + $0xc0] sm:$0xff]
        %v461 = vld [vmem:[#allocation7 + $0xc8] sm:$0xff]
        %v462 = vld [vmem:[#allocation7 + $0xd0] sm:$0xff]
        %v463 = vld [vmem:[#allocation7 + $0xd8] sm:$0xff]
        %v464 = vld [vmem:[#allocation7 + $0xe0] sm:$0xff]
        %v465 = vld [vmem:[#allocation7 + $0xe8] sm:$0xff]
        %v466 = vld [vmem:[#allocation7 + $0xf0] sm:$0xff]
        %v467 = vld [vmem:[#allocation7 + $0xf8] sm:$0xff]
        %468 = vmatprep.subr.mxu0 %v467
        %469 = vmatpush1.msra.mxu0 %v466
        %470 = vmatprep.subr.mxu0 %v465
        %471 = vmatpush1.msra.mxu0 %v464
        %472 = vmatprep.subr.mxu0 %v463
        %473 = vmatpush1.msra.mxu0 %v462
        %474 = vmatprep.subr.mxu0 %v461
        %475 = vmatpush1.msra.mxu0 %v460
        %476 = vmatprep.subr.mxu0 %v459
        %477 = vmatpush1.msra.mxu0 %v458
        %478 = vmatprep.subr.mxu0 %v457
        %479 = vmatpush1.msra.mxu0 %v456
        %480 = vmatprep.subr.mxu0 %v455
        %481 = vmatpush1.msra.mxu0 %v454
        %482 = vmatprep.subr.mxu0 %v453
        %483 = vmatpush1.msra.mxu0 %v452
        %484 = vmatprep.subr.mxu0 %v451
        %485 = vmatpush1.msra.mxu0 %v450
        %486 = vmatprep.subr.mxu0 %v449
        %487 = vmatpush1.msra.mxu0 %v448
        %488 = vmatprep.subr.mxu0 %v447
        %489 = vmatpush1.msra.mxu0 %v446
        %490 = vmatprep.subr.mxu0 %v445
        %491 = vmatpush1.msra.mxu0 %v444
        %492 = vmatprep.subr.mxu0 %v443
        %493 = vmatpush1.msra.mxu0 %v442
        %494 = vmatprep.subr.mxu0 %v441
        %495 = vmatpush1.msra.mxu0 %v440
        %496 = vmatprep.subr.mxu0 %v439
        %497 = vmatpush1.msra.mxu0 %v438
        %498 = vmatprep.subr.mxu0 %v437
        %499 = vmatpush1.msra.mxu0 %v436
        %500 = vmatprep.subr.mxu0 0.0
        %501 = vmatpush2.msra.mxu0 0.0
        %502 = vmatprep.subr.mxu0 0.0
        %503 = vmatpush2.msra.mxu0 0.0
        %504 = vmatprep.subr.mxu0 0.0
        %505 = vmatpush2.msra.mxu0 0.0
        %506 = vmatprep.subr.mxu0 0.0
        %507 = vmatpush2.msra.mxu0 0.0
        %508 = vmatprep.subr.mxu0 0.0
        %509 = vmatpush2.msra.mxu0 0.0
        %510 = vmatprep.subr.mxu0 0.0
        %511 = vmatpush2.msra.mxu0 0.0
        %512 = vmatprep.subr.mxu0 0.0
        %513 = vmatpush2.msra.mxu0 0.0
        %514 = vmatprep.subr.mxu0 0.0
        %515 = vmatpush2.msra.mxu0 0.0
        %516 = vmatprep.subr.mxu0 0.0
        %517 = vmatpush2.msra.mxu0 0.0
        %518 = vmatprep.subr.mxu0 0.0
        %519 = vmatpush2.msra.mxu0 0.0
        %520 = vmatprep.subr.mxu0 0.0
        %521 = vmatpush2.msra.mxu0 0.0
        %522 = vmatprep.subr.mxu0 0.0
        %523 = vmatpush2.msra.mxu0 0.0
        %524 = vmatprep.subr.mxu0 0.0
        %525 = vmatpush2.msra.mxu0 0.0
        %526 = vmatprep.subr.mxu0 0.0
        %527 = vmatpush2.msra.mxu0 0.0
        %528 = vmatprep.subr.mxu0 0.0
        %529 = vmatpush2.msra.mxu0 0.0
        %530 = vmatprep.subr.mxu0 0.0
        %531 = vmatpush2.msra.mxu0 0.0
        %532 = vmatprep.mubr.f32.mxu0 0.0
        %533 = vmatmul.mubr.f32.gmra.mxu0 %v434
        %v534 = vpop.f32.mrf.mxu0
        %v535 = vadd.f32 0.0, %v534
        %v536 = vpop.f32.mrf.mxu0
        %v537 = vadd.f32 0.0, %v536
        %538 = vmatprep.mubr.f32.mxu0 0.0
        %539 = vmatmul.mubr.f32.gmra.mxu0 %v435
        %v540 = vpop.f32.mrf.mxu0
        %v541 = vadd.f32 0.0, %v540
        %v542 = vpop.f32.mrf.mxu0
        %v543 = vadd.f32 0.0, %v542
        %544 = vdwg.mxu0
        %545 = vmatprep.subr.mxu0 %v433
        %546 = vmatpush1.msra.mxu0 %v432
        %547 = vmatprep.subr.mxu0 %v431
        %548 = vmatpush1.msra.mxu0 %v430
        %549 = vmatprep.subr.mxu0 %v429
        %550 = vmatpush1.msra.mxu0 %v428
        %551 = vmatprep.subr.mxu0 %v427
        %552 = vmatpush1.msra.mxu0 %v426
        %553 = vmatprep.subr.mxu0 %v425
        %554 = vmatpush1.msra.mxu0 %v424
        %555 = vmatprep.subr.mxu0 %v423
        %556 = vmatpush1.msra.mxu0 %v422
        %557 = vmatprep.subr.mxu0 %v421
        %558 = vmatpush1.msra.mxu0 %v420
        %559 = vmatprep.subr.mxu0 %v419
        %560 = vmatpush1.msra.mxu0 %v418
        %561 = vmatprep.subr.mxu0 %v417
        %562 = vmatpush1.msra.mxu0 %v416
        %563 = vmatprep.subr.mxu0 %v415
        %564 = vmatpush1.msra.mxu0 %v414
        %565 = vmatprep.subr.mxu0 %v413
        %566 = vmatpush1.msra.mxu0 %v412
        %567 = vmatprep.subr.mxu0 %v411
        %568 = vmatpush1.msra.mxu0 %v410
        %569 = vmatprep.subr.mxu0 %v409
        %570 = vmatpush1.msra.mxu0 %v408
        %571 = vmatprep.subr.mxu0 %v407
        %572 = vmatpush1.msra.mxu0 %v406
        %573 = vmatprep.subr.mxu0 %v405
        %574 = vmatpush1.msra.mxu0 %v404
        %575 = vmatprep.subr.mxu0 %v403
        %576 = vmatpush1.msra.mxu0 %v402
        %577 = vmatprep.subr.mxu0 0.0
        %578 = vmatpush2.msra.mxu0 0.0
        %579 = vmatprep.subr.mxu0 0.0
        %580 = vmatpush2.msra.mxu0 0.0
        %581 = vmatprep.subr.mxu0 0.0
        %582 = vmatpush2.msra.mxu0 0.0
        %583 = vmatprep.subr.mxu0 0.0
        %584 = vmatpush2.msra.mxu0 0.0
        %585 = vmatprep.subr.mxu0 0.0
        %586 = vmatpush2.msra.mxu0 0.0
        %587 = vmatprep.subr.mxu0 0.0
        %588 = vmatpush2.msra.mxu0 0.0
        %589 = vmatprep.subr.mxu0 0.0
        %590 = vmatpush2.msra.mxu0 0.0
        %591 = vmatprep.subr.mxu0 0.0
        %592 = vmatpush2.msra.mxu0 0.0
        %593 = vmatprep.subr.mxu0 0.0
        %594 = vmatpush2.msra.mxu0 0.0
        %595 = vmatprep.subr.mxu0 0.0
        %596 = vmatpush2.msra.mxu0 0.0
        %597 = vmatprep.subr.mxu0 0.0
        %598 = vmatpush2.msra.mxu0 0.0
        %599 = vmatprep.subr.mxu0 0.0
        %600 = vmatpush2.msra.mxu0 0.0
        %601 = vmatprep.subr.mxu0 0.0
        %602 = vmatpush2.msra.mxu0 0.0
        %603 = vmatprep.subr.mxu0 0.0
        %604 = vmatpush2.msra.mxu0 0.0
        %605 = vmatprep.subr.mxu0 0.0
        %606 = vmatpush2.msra.mxu0 0.0
        %607 = vmatprep.subr.mxu0 0.0
        %608 = vmatpush2.msra.mxu0 0.0
        %609 = vmatprep.mubr.f32.mxu0 0.0
        %610 = vmatmul.mubr.f32.gmra.mxu0 %v400
        %v611 = vpop.f32.mrf.mxu0
        %v612 = vadd.f32 %v535, %v611
        %v613 = vpop.f32.mrf.mxu0
        %v614 = vadd.f32 %v537, %v613
        %615 = vmatprep.mubr.f32.mxu0 0.0
        %616 = vmatmul.mubr.f32.gmra.mxu0 %v401
        %v617 = vpop.f32.mrf.mxu0
        %v618 = vadd.f32 %v541, %v617
        %v619 = vpop.f32.mrf.mxu0
        %v620 = vadd.f32 %v543, %v619
        %621 = vdwg.mxu0
        %v622 = vmul.f32 %v612, %v612
        %v623 = vmul.f32 %v618, %v618
        %v624 = vmul.f32 %v614, %v614
        %v625 = vmul.f32 %v620, %v620
        %v626 = vadd.f32 %v622, %v624
        %v627 = vadd.f32 %v623, %v625
        %v628 = vld [vmem:[#allocation9] sm:$0xff]
        %v629 = vld [vmem:[#allocation9 + $0x8] sm:$0xff]
        %v630 = vld [vmem:[#allocation9 + $0x10] sm:$0xff]
        %v631 = vld [vmem:[#allocation9 + $0x18] sm:$0xff]
        %v632 = vld [vmem:[#allocation9 + $0x20] sm:$0xff]
        %v633 = vld [vmem:[#allocation9 + $0x28] sm:$0xff]
        %v634 = vld [vmem:[#allocation9 + $0x30] sm:$0xff]
        %v635 = vld [vmem:[#allocation9 + $0x38] sm:$0xff]
        %v636 = vld [vmem:[#allocation9 + $0x40] sm:$0xff]
        %v637 = vld [vmem:[#allocation9 + $0x48] sm:$0xff]
        %v638 = vld [vmem:[#allocation9 + $0x50] sm:$0xff]
        %v639 = vld [vmem:[#allocation9 + $0x58] sm:$0xff]
        %v640 = vld [vmem:[#allocation9 + $0x60] sm:$0xff]
        %v641 = vld [vmem:[#allocation9 + $0x68] sm:$0xff]
        %v642 = vld [vmem:[#allocation9 + $0x70] sm:$0xff]
        %v643 = vld [vmem:[#allocation9 + $0x78] sm:$0xff]
        %644 = vmatprep.subr.mxu0 0.0
        %645 = vmatpush1.msra.mxu0 %v643
        %646 = vmatprep.subr.mxu0 0.0
        %647 = vmatpush1.msra.mxu0 %v642
        %648 = vmatprep.subr.mxu0 0.0
        %649 = vmatpush1.msra.mxu0 %v641
        %650 = vmatprep.subr.mxu0 0.0
        %651 = vmatpush1.msra.mxu0 %v640
        %652 = vmatprep.subr.mxu0 0.0
        %653 = vmatpush1.msra.mxu0 %v639
        %654 = vmatprep.subr.mxu0 0.0
        %655 = vmatpush1.msra.mxu0 %v638
        %656 = vmatprep.subr.mxu0 0.0
        %657 = vmatpush1.msra.mxu0 %v637
        %658 = vmatprep.subr.mxu0 0.0
        %659 = vmatpush1.msra.mxu0 %v636
        %660 = vmatprep.subr.mxu0 0.0
        %661 = vmatpush1.msra.mxu0 %v635
        %662 = vmatprep.subr.mxu0 0.0
        %663 = vmatpush1.msra.mxu0 %v634
        %664 = vmatprep.subr.mxu0 0.0
        %665 = vmatpush1.msra.mxu0 %v633
        %666 = vmatprep.subr.mxu0 0.0
        %667 = vmatpush1.msra.mxu0 %v632
        %668 = vmatprep.subr.mxu0 0.0
        %669 = vmatpush1.msra.mxu0 %v631
        %670 = vmatprep.subr.mxu0 0.0
        %671 = vmatpush1.msra.mxu0 %v630
        %672 = vmatprep.subr.mxu0 0.0
        %673 = vmatpush1.msra.mxu0 %v629
        %674 = vmatprep.subr.mxu0 0.0
        %675 = vmatpush1.msra.mxu0 %v628
        %676 = vmatprep.subr.mxu0 0.0
        %677 = vmatpush2.msra.mxu0 0.0
        %678 = vmatprep.subr.mxu0 0.0
        %679 = vmatpush2.msra.mxu0 0.0
        %680 = vmatprep.subr.mxu0 0.0
        %681 = vmatpush2.msra.mxu0 0.0
        %682 = vmatprep.subr.mxu0 0.0
        %683 = vmatpush2.msra.mxu0 0.0
        %684 = vmatprep.subr.mxu0 0.0
        %685 = vmatpush2.msra.mxu0 0.0
        %686 = vmatprep.subr.mxu0 0.0
        %687 = vmatpush2.msra.mxu0 0.0
        %688 = vmatprep.subr.mxu0 0.0
        %689 = vmatpush2.msra.mxu0 0.0
        %690 = vmatprep.subr.mxu0 0.0
        %691 = vmatpush2.msra.mxu0 0.0
        %692 = vmatprep.subr.mxu0 0.0
        %693 = vmatpush2.msra.mxu0 0.0
        %694 = vmatprep.subr.mxu0 0.0
        %695 = vmatpush2.msra.mxu0 0.0
        %696 = vmatprep.subr.mxu0 0.0
        %697 = vmatpush2.msra.mxu0 0.0
        %698 = vmatprep.subr.mxu0 0.0
        %699 = vmatpush2.msra.mxu0 0.0
        %700 = vmatprep.subr.mxu0 0.0
        %701 = vmatpush2.msra.mxu0 0.0
        %702 = vmatprep.subr.mxu0 0.0
        %703 = vmatpush2.msra.mxu0 0.0
        %704 = vmatprep.subr.mxu0 0.0
        %705 = vmatpush2.msra.mxu0 0.0
        %706 = vmatprep.subr.mxu0 0.0
        %707 = vmatpush2.msra.mxu0 0.0
        %708 = vmatprep.mubr.f32.mxu0 0.0
        %709 = vmatmul.mubr.f32.gmra.mxu0 %v626
        %v710 = vpop.f32.mrf.mxu0
        %v711 = vadd.f32 1e-06, %v710
        %v712 = vpop.f32.mrf.mxu0
        %713 = vmatprep.mubr.f32.mxu0 0.0
        %714 = vmatmul.mubr.f32.gmra.mxu0 %v627
        %v715 = vpop.f32.mrf.mxu0
        %v716 = vadd.f32 1e-06, %v715
        %v717 = vpop.f32.mrf.mxu0
        %718 = vdwg.mxu0
        %v719 = vlog2.pop %v711
        %v720 = vmul.f32 %v719, 0.6931472
        %v721 = vlog2.pop %v716
        %v722 = vmul.f32 %v721, 0.6931472
        %v723 = vld [vmem:[#allocation10] sm:$0xff]
        %v724 = vld [vmem:[#allocation10 + $0x8] sm:$0xff]
        %v725 = vld [vmem:[#allocation10 + $0x10] sm:$0xff]
        %v726 = vld [vmem:[#allocation10 + $0x18] sm:$0xff]
        %v727 = vld [vmem:[#allocation10 + $0x20] sm:$0xff]
        %728 = vmatprep.subr.mxu0 0.0
        %729 = vmatpush1.xpose.msra.mxu0 0.0
        %730 = vmatprep.subr.mxu0 0.0
        %731 = vmatpush1.xpose.msra.mxu0 0.0
        %732 = vmatprep.subr.mxu0 0.0
        %733 = vmatpush1.xpose.msra.mxu0 0.0
        %734 = vmatprep.subr.mxu0 0.0
        %735 = vmatpush1.xpose.msra.mxu0 0.0
        %736 = vmatprep.subr.mxu0 0.0
        %737 = vmatpush1.xpose.msra.mxu0 0.0
        %738 = vmatprep.subr.mxu0 0.0
        %739 = vmatpush1.xpose.msra.mxu0 0.0
        %740 = vmatprep.subr.mxu0 0.0
        %741 = vmatpush1.xpose.msra.mxu0 0.0
        %742 = vmatprep.subr.mxu0 0.0
        %743 = vmatpush1.xpose.msra.mxu0 0.0
        %744 = vmatprep.subr.mxu0 0.0
        %745 = vmatpush1.xpose.msra.mxu0 0.0
        %746 = vmatprep.subr.mxu0 0.0
        %747 = vmatpush1.xpose.msra.mxu0 0.0
        %748 = vmatprep.subr.mxu0 0.0
        %749 = vmatpush1.xpose.msra.mxu0 0.0
        %750 = vmatprep.subr.mxu0 0.0
        %751 = vmatpush1.xpose.msra.mxu0 0.0
        %752 = vmatprep.subr.mxu0 0.0
        %753 = vmatpush1.xpose.msra.mxu0 0.0
        %754 = vmatprep.subr.mxu0 0.0
        %755 = vmatpush1.xpose.msra.mxu0 0.0
        %756 = vmatprep.subr.mxu0 0.0
        %757 = vmatpush1.xpose.msra.mxu0 %v722
        %758 = vmatprep.subr.mxu0 0.0
        %759 = vmatpush1.xpose.msra.mxu0 %v720
        %760 = vmatprep.subr.mxu0 0.0
        %761 = vmatpush2.xpose.msra.mxu0 0.0
        %762 = vmatprep.subr.mxu0 0.0
        %763 = vmatpush2.xpose.msra.mxu0 0.0
        %764 = vmatprep.subr.mxu0 0.0
        %765 = vmatpush2.xpose.msra.mxu0 0.0
        %766 = vmatprep.subr.mxu0 0.0
        %767 = vmatpush2.xpose.msra.mxu0 0.0
        %768 = vmatprep.subr.mxu0 0.0
        %769 = vmatpush2.xpose.msra.mxu0 0.0
        %770 = vmatprep.subr.mxu0 0.0
        %771 = vmatpush2.xpose.msra.mxu0 0.0
        %772 = vmatprep.subr.mxu0 0.0
        %773 = vmatpush2.xpose.msra.mxu0 0.0
        %774 = vmatprep.subr.mxu0 0.0
        %775 = vmatpush2.xpose.msra.mxu0 0.0
        %776 = vmatprep.subr.mxu0 0.0
        %777 = vmatpush2.xpose.msra.mxu0 0.0
        %778 = vmatprep.subr.mxu0 0.0
        %779 = vmatpush2.xpose.msra.mxu0 0.0
        %780 = vmatprep.subr.mxu0 0.0
        %781 = vmatpush2.xpose.msra.mxu0 0.0
        %782 = vmatprep.subr.mxu0 0.0
        %783 = vmatpush2.xpose.msra.mxu0 0.0
        %784 = vmatprep.subr.mxu0 0.0
        %785 = vmatpush2.xpose.msra.mxu0 0.0
        %786 = vmatprep.subr.mxu0 0.0
        %787 = vmatpush2.xpose.msra.mxu0 0.0
        %788 = vmatprep.subr.mxu0 0.0
        %789 = vmatpush2.xpose.msra.mxu0 0.0
        %790 = vmatprep.subr.mxu0 0.0
        %791 = vmatpush2.xpose.msra.mxu0 0.0
        %792 = vmatprep.mubr.f32.mxu0 0.0
        %793 = vmatmul.mubr.f32.gmra.mxu0 %v723
        %v794 = vpop.f32.mrf.mxu0
        %v795 = vadd.f32 0.0, %v794
        %v796 = vpop.f32.mrf.mxu0
        %797 = vmatprep.mubr.f32.mxu0 0.0
        %798 = vmatmul.mubr.f32.gmra.mxu0 %v724
        %v799 = vpop.f32.mrf.mxu0
        %v800 = vadd.f32 0.0, %v799
        %v801 = vpop.f32.mrf.mxu0
        %802 = vmatprep.mubr.f32.mxu0 0.0
        %803 = vmatmul.mubr.f32.gmra.mxu0 %v725
        %v804 = vpop.f32.mrf.mxu0
        %v805 = vadd.f32 0.0, %v804
        %v806 = vpop.f32.mrf.mxu0
        %807 = vmatprep.mubr.f32.mxu0 0.0
        %808 = vmatmul.mubr.f32.gmra.mxu0 %v726
        %v809 = vpop.f32.mrf.mxu0
        %v810 = vadd.f32 0.0, %v809
        %v811 = vpop.f32.mrf.mxu0
        %812 = vmatprep.mubr.f32.mxu0 0.0
        %813 = vmatmul.mubr.f32.gmra.mxu0 %v727
        %v814 = vpop.f32.mrf.mxu0
        %v815 = vadd.f32 0.0, %v814
        %v816 = vpop.f32.mrf.mxu0
        %817 = vdwg.mxu0
        %vm818 = vcmask 130048
        %819 = vst.msk [vmem:[%s399] sm:$0xff] %vm818, %v795
        %820 = vst.msk [vmem:[%s399 + $0x8] sm:$0xff] %vm818, %v800
        %821 = vst.msk [vmem:[%s399 + $0x10] sm:$0xff] %vm818, %v805
        %822 = vst.msk [vmem:[%s399 + $0x18] sm:$0xff] %vm818, %v810
        %823 = vst.msk [vmem:[%s399 + $0x20] sm:$0xff] %vm818, %v815
        %p824 = scmp.lt.s32.totalorder %s29, 1
        %s825 = scalar_select %p824, %s29, 1
        %p826 = scmp.lt.s32.totalorder %s30, 0
        %s827 = scalar_select %p826, %s30, 0
        %s828 = smul.addr %s825, 5
        %s829 = sadd.s32 %s827, %s828
        %s830 = smul.addr %s829, 8
        %s831 = scalar_lea.vmem %s6, %s830
        // Predicated region
        $region69: #{tpu_custom_call.1} parent=43 // pred_check
          %p832 = pneg %p197
        $region70: #{tpu_custom_call.1} parent=43 // pred_check_branch
          %834 = sbr.rel (%p832) target = $region72
        $region71: #{tpu_custom_call.1} parent=43 // pred_region
          _
        $region72: #{tpu_custom_call.1} parent=43 // pred_fallthru
          _
      $region44: #{tpu_custom_call.1} parent=5 // pred_fallthru
        _
      %p835 = scmp.le.s32.totalorder 2, %s20
      // Predicated region
      $region73: #{tpu_custom_call.1} parent=5 // pred_check
        %p836 = pneg %p835
      $region74: #{tpu_custom_call.1} parent=5 // pred_check_branch
        %838 = sbr.rel (%p836) target = $region76
      $region75: #{tpu_custom_call.1} parent=5 // pred_region
        %s839 = ssub.s32 %s20, 2
        // Predicated region
        $region77: #{tpu_custom_call.1} parent=75 // pred_check
          %p840 = pneg %p203
        $region78: #{tpu_custom_call.1} parent=75 // pred_check_branch
          %842 = sbr.rel (%p840) target = $region80
        $region79: #{tpu_custom_call.1} parent=75 // pred_region
          %p843 = scmp.lt.s32.totalorder %s31, 1
          %s844 = scalar_select %p843, %s31, 1
          %p845 = scmp.lt.s32.totalorder %s32, 0
          %s846 = scalar_select %p845, %s32, 0
          %s847 = smul.addr %s844, 5
          %s848 = sadd.s32 %s846, %s847
          %s849 = smul.addr %s848, 8
          %s850 = scalar_lea.vmem %s6, %s849
        $region80: #{tpu_custom_call.1} parent=75 // pred_fallthru
          _
      $region76: #{tpu_custom_call.1} parent=5 // pred_fallthru
        _
    $region6: #{tpu_custom_call.1} parent=1 // loop_footer
      %s24 = sadd.s32 1, %s20
    $region7: #{tpu_custom_call.1} parent=1 // loop_footer_branch
      %19 = sbr.rel target = $region3
    $region8: #{tpu_custom_call.1} parent=1 // loop_exit
      _
    %851 = vsyncpa [#allocation3], 1
    %s852 = scalar_lea.sflag [#allocation3], 1
    %853 = vsyncpa %s852, 1
    %854 = vsyncpa [#allocation5], 1
    %s855 = scalar_lea.sflag [#allocation5], 1
    %856 = vsyncpa %s855, 1
    %857 = vsyncpa [#allocation8], 1
    %858 = vsyncpa [#allocation11], 1

</llo_original>
